<compile_context>
chip_gen: v5e
topology: v5e:2x2
jax: 0.10.0
libtpu: 0.0.40
codegen_flags: <defaults>
</compile_context>

<pallas_src>
import functools
import math

import jax
import jax.numpy as jnp
from jax.experimental import pallas as pl
from jax.experimental.pallas import tpu as pltpu

# rows of the packed (8, 128) bias / LayerNorm slab
_R_BQKV, _R_BO, _R_B1, _R_B2, _R_G1, _R_BE1, _R_G2, _R_BE2 = range(8)


def encoder_layer_kernel(x_ref, pos_ref, mask_ref, wqkv_ref, wo_ref, w1_ref, w2_ref,
                         vec_ref, o_ref, *, nhead, head_dim):
    f32 = jnp.float32
    mxu_dt = wqkv_ref.dtype                 # f32 by default; bf16 if mxu_bf16=True

    x = x_ref[...]                          # (toks, D) f32, value input (src)
    qk = x + pos_ref[...]                   # q = k = src + pos (pos pre-tiled over batch)
    toks, D = x.shape
    H, Dh = nhead, head_dim
    F = w1_ref.shape[1]
    vec = vec_ref[...]                      # (8, 128) packed bias/LN slab

    # ---- fused QKV projection: one MXU dispatch ----------------------------------------
    # rows [0:toks)      = src+pos  -> provides q and k
    # rows [toks:2*toks) = src      -> provides v
    lhs = jnp.concatenate([qk, x], axis=0).astype(mxu_dt)              # (2*toks, D)
    qkv = jnp.dot(lhs, wqkv_ref[...], preferred_element_type=f32)      # (2*toks, 3D)
    qkv = qkv + vec[_R_BQKV:_R_BQKV + 1, :3 * D]                       # bias (q part pre-scaled)
    q = qkv[:toks, 0 * D:1 * D]
    k = qkv[:toks, 1 * D:2 * D]
    v = qkv[toks:, 2 * D:3 * D]

    mask = mask_ref[...]                                               # (toks, toks) additive

    # ---- per-head attention (H small -> unrolled; heads are static lane slices) --------
    # TODO(synk): switch to lax.fori_loop / a grid axis over heads if H grows large.
    ctx_heads = []
    for h in range(H):
        sl = slice(h * Dh, (h + 1) * Dh)
        qh = q[:, sl].astype(mxu_dt)
        kh = k[:, sl].astype(mxu_dt)
        vh = v[:, sl].astype(mxu_dt)

        # scores = qh @ kh.T without materializing a transpose (contract last dims).
        s = jax.lax.dot_general(qh, kh, (((1,), (1,)), ((), ())),
                                preferred_element_type=f32)            # (toks, toks)
        s = s + mask
        s = s - jnp.max(s, axis=-1, keepdims=True)
        p = jnp.exp(s)
        p = p * pl.reciprocal(jnp.sum(p, axis=-1, keepdims=True), approx=True)
        ctx_heads.append(jnp.dot(p.astype(mxu_dt), vh,
                                 preferred_element_type=f32))          # (toks, Dh)

    # ---- fused output projection: one K=D matmul ----------------------------------------
    ctx = jnp.concatenate(ctx_heads, axis=-1)                          # (toks, D)
    src2 = (jnp.dot(ctx.astype(mxu_dt), wo_ref[...], preferred_element_type=f32)
            + vec[_R_BO:_R_BO + 1, :D])

    # ---- residual + LayerNorm1 (f32) ----------------------------------------------------
    y = x + src2
    mu = jnp.mean(y, axis=-1, keepdims=True)
    var = jnp.mean((y - mu) ** 2, axis=-1, keepdims=True)
    y = ((y - mu) * jax.lax.rsqrt(var + 1e-5) * vec[_R_G1:_R_G1 + 1, :D]
         + vec[_R_BE1:_R_BE1 + 1, :D])

    # ---- feed-forward (ReLU) + residual + LayerNorm2 ------------------------------------
    hid = (jnp.dot(y.astype(mxu_dt), w1_ref[...], preferred_element_type=f32)
           + vec[_R_B1:_R_B1 + 1, :F])
    hid = jnp.maximum(hid, 0.0)
    ff = (jnp.dot(hid.astype(mxu_dt), w2_ref[...], preferred_element_type=f32)
          + vec[_R_B2:_R_B2 + 1, :D])
    z = y + ff
    mu2 = jnp.mean(z, axis=-1, keepdims=True)
    var2 = jnp.mean((z - mu2) ** 2, axis=-1, keepdims=True)
    o_ref[...] = ((z - mu2) * jax.lax.rsqrt(var2 + 1e-5) * vec[_R_G2:_R_G2 + 1, :D]
                  + vec[_R_BE2:_R_BE2 + 1, :D]).astype(o_ref.dtype)


def transformer_encoder_layer(src, pos, params, *, nhead, mxu_bf16=False):
    B, S, D = src.shape
    assert D % nhead == 0, "d_model must be divisible by nhead"
    H = nhead
    Dh = D // H
    F = params["w1"].shape[0]
    scale = 1.0 / math.sqrt(Dh)
    wdt = jnp.bfloat16 if mxu_bf16 else jnp.float32

    # --- host-side (one-time) weight preprocessing: transpose, fuse, fold scale, pack ----
    wqkv = jnp.concatenate(
        [params["wq"].T * scale, params["wk"].T, params["wv"].T], axis=1).astype(wdt)  # (D, 3D)
    wo_t = params["wo"].T.astype(wdt)                                                  # (D, D)
    w1_t = params["w1"].T.astype(wdt)                                                  # (D, F)
    w2_t = params["w2"].T.astype(wdt)                                                  # (F, D)

    lanes = max(3 * D, F, D)
    lanes = ((lanes + 127) // 128) * 128

    def row(v):
        v = v.reshape(-1).astype(jnp.float32)
        return jnp.pad(v, (0, lanes - v.shape[0]))

    vec = jnp.stack([
        row(jnp.concatenate([params["bq"][0] * scale, params["bk"][0], params["bv"][0]])),
        row(params["bo"][0]),
        row(params["b1"][0]),
        row(params["b2"][0]),
        row(params["g1"][0]),
        row(params["be1"][0]),
        row(params["g2"][0]),
        row(params["be2"][0]),
    ])                                                                                 # (8, lanes)

    # Additive block-diagonal mask: a token attends only inside its own batch element.
    batch_idx = jnp.repeat(jnp.arange(B), S)
    mask = jnp.where(batch_idx[:, None] == batch_idx[None, :],
                     jnp.float32(0.0), jnp.float32(-1e30))                             # (B*S, B*S)

    x2d = src.reshape(B * S, D)
    pos2d = jnp.tile(pos, (B, 1))                                                      # (B*S, D)

    kernel = functools.partial(encoder_layer_kernel, nhead=H, head_dim=Dh)
    inputs = (x2d, pos2d, mask, wqkv, wo_t, w1_t, w2_t, vec)

    def full_spec(a):
        nd = a.ndim
        return pl.BlockSpec(a.shape, lambda i, _nd=nd: (0,) * _nd)

    out = pl.pallas_call(
        kernel,
        out_shape=jax.ShapeDtypeStruct((B * S, D), src.dtype),
        grid=(1,),
        in_specs=[full_spec(a) for a in inputs],
        out_specs=pl.BlockSpec((B * S, D), lambda i: (0, 0)),
        compiler_params=pltpu.CompilerParams(dimension_semantics=("arbitrary",)),
    )(*inputs)
    return out.reshape(B, S, D)


def ref_forward(src, pos, prm, *, nhead):
    """Pure-JAX f32 reference equivalent to the PyTorch module in eval mode."""
    B, S, D = src.shape
    Dh = D // nhead
    scale = 1.0 / math.sqrt(Dh)

    def ln(t, g, b):
        mu = jnp.mean(t, -1, keepdims=True)
        var = jnp.mean((t - mu) ** 2, -1, keepdims=True)
        return (t - mu) * jax.lax.rsqrt(var + 1e-5) * g + b

    x = src
    qk = x + pos[None]
    q = (qk @ prm["wq"].T + prm["bq"][0]) * scale
    k = qk @ prm["wk"].T + prm["bk"][0]
    v = x @ prm["wv"].T + prm["bv"][0]
    qh = q.reshape(B, S, nhead, Dh)
    kh = k.reshape(B, S, nhead, Dh)
    vh = v.reshape(B, S, nhead, Dh)
    scores = jnp.einsum("bqhd,bkhd->bhqk", qh, kh)
    probs = jax.nn.softmax(scores, axis=-1)
    attn = jnp.einsum("bhqk,bkhd->bqhd", probs, vh).reshape(B, S, D)
    src2 = attn @ prm["wo"].T + prm["bo"][0]
    y = ln(x + src2, prm["g1"][0], prm["be1"][0])
    hid = jnp.maximum(y @ prm["w1"].T + prm["b1"][0], 0.0)
    ff = hid @ prm["w2"].T + prm["b2"][0]
    return ln(y + ff, prm["g2"][0], prm["be2"][0])


if __name__ == "__main__":
    B, S, D, H, F = 2, 8, 32, 4, 64   # batch, seq, d_model, nhead, dim_feedforward

    key = jax.random.PRNGKey(0)
    keys = jax.random.split(key, 12)

    def w(k, shape, s=0.05):
        return (s * jax.random.normal(k, shape)).astype(jnp.float32)

    params = {
        # attention in-projections (PyTorch in_proj split into q/k/v)
        "wq": w(keys[0], (D, D)), "bq": w(keys[1], (1, D)),
        "wk": w(keys[2], (D, D)), "bk": w(keys[3], (1, D)),
        "wv": w(keys[4], (D, D)), "bv": w(keys[5], (1, D)),
        # attention out projection
        "wo": w(keys[6], (D, D)), "bo": w(keys[7], (1, D)),
        # feed-forward
        "w1": w(keys[8], (F, D)), "b1": w(keys[9], (1, F)),
        "w2": w(keys[10], (D, F)), "b2": w(keys[11], (1, D)),
        # layer norms
        "g1": jnp.ones((1, D), jnp.float32), "be1": jnp.zeros((1, D), jnp.float32),
        "g2": jnp.ones((1, D), jnp.float32), "be2": jnp.zeros((1, D), jnp.float32),
    }

    src = jax.random.normal(jax.random.PRNGKey(1), (B, S, D), jnp.float32)
    pos = jax.random.normal(jax.random.PRNGKey(2), (S, D), jnp.float32)

    out = transformer_encoder_layer(src, pos, params, nhead=H)
    out = jax.block_until_ready(out)
    assert out.shape == (B, S, D)

    ref = ref_forward(src, pos, params, nhead=H)
    assert jnp.allclose(out, ref, rtol=5e-3, atol=5e-3), "mismatch vs f32 reference"

    print("KERNEL_OK")
</pallas_src>

<mosaic_0001>
module attributes {stable_mosaic.version = 11 : i64} {
  func.func @encoder_layer_kernel(%arg0: i32, %arg1: memref<16x32xf32, #tpu.memory_space<vmem>>, %arg2: memref<16x32xf32, #tpu.memory_space<vmem>>, %arg3: memref<16x16xf32, #tpu.memory_space<vmem>>, %arg4: memref<32x96xf32, #tpu.memory_space<vmem>>, %arg5: memref<32x32xf32, #tpu.memory_space<vmem>>, %arg6: memref<32x64xf32, #tpu.memory_space<vmem>>, %arg7: memref<64x32xf32, #tpu.memory_space<vmem>>, %arg8: memref<8x128xf32, #tpu.memory_space<vmem>>, %arg9: memref<16x32xf32, #tpu.memory_space<vmem>>) attributes {dimension_semantics = [#tpu.dimension_semantics<arbitrary>], iteration_bounds = array<i64: 1>, scalar_prefetch = 0 : i64, scratch_operands = 0 : i64, tpu.core_type = #tpu.core_type<tc>, window_params = [{pipeline_mode = #tpu.pipeline_mode<synchronous>, transform_indices = @transform_0, window_bounds = array<i64: 16, 32>}, {pipeline_mode = #tpu.pipeline_mode<synchronous>, transform_indices = @transform_1, window_bounds = array<i64: 16, 32>}, {pipeline_mode = #tpu.pipeline_mode<synchronous>, transform_indices = @transform_2, window_bounds = array<i64: 16, 16>}, {pipeline_mode = #tpu.pipeline_mode<synchronous>, transform_indices = @transform_3, window_bounds = array<i64: 32, 96>}, {pipeline_mode = #tpu.pipeline_mode<synchronous>, transform_indices = @transform_4, window_bounds = array<i64: 32, 32>}, {pipeline_mode = #tpu.pipeline_mode<synchronous>, transform_indices = @transform_5, window_bounds = array<i64: 32, 64>}, {pipeline_mode = #tpu.pipeline_mode<synchronous>, transform_indices = @transform_6, window_bounds = array<i64: 64, 32>}, {pipeline_mode = #tpu.pipeline_mode<synchronous>, transform_indices = @transform_7, window_bounds = array<i64: 8, 128>}, {pipeline_mode = #tpu.pipeline_mode<synchronous>, transform_indices = @transform_8, window_bounds = array<i64: 16, 32>}]} {
    %c0 = arith.constant 0 : index
    %c0_0 = arith.constant 0 : index
    %0 = vector.load %arg1[%c0, %c0_0] : memref<16x32xf32, #tpu.memory_space<vmem>>, vector<16x32xf32>
    %c0_1 = arith.constant 0 : index
    %c0_2 = arith.constant 0 : index
    %1 = vector.load %arg2[%c0_1, %c0_2] : memref<16x32xf32, #tpu.memory_space<vmem>>, vector<16x32xf32>
    %2 = arith.addf %0, %1 : vector<16x32xf32>
    %c0_3 = arith.constant 0 : index
    %c0_4 = arith.constant 0 : index
    %3 = vector.load %arg8[%c0_3, %c0_4] : memref<8x128xf32, #tpu.memory_space<vmem>>, vector<8x128xf32>
    %4 = tpu.concatenate %2, %0 in 0 : vector<16x32xf32>, vector<16x32xf32> -> vector<32x32xf32>
    %c0_5 = arith.constant 0 : index
    %c0_6 = arith.constant 0 : index
    %5 = vector.load %arg4[%c0_5, %c0_6] : memref<32x96xf32, #tpu.memory_space<vmem>>, vector<32x96xf32>
    %cst = arith.constant dense<0.000000e+00> : vector<32x96xf32>
    %6 = tpu.matmul %4, %5, %cst {dimension_numbers = #tpu.dot_dimension_numbers<[1], [0], [0], [1], [0, 0, 1, 1], [], []>} : vector<32x32xf32>, vector<32x96xf32>, vector<32x96xf32> -> vector<32x96xf32>
    %7 = vector.extract_strided_slice %3 {offsets = [0, 0], sizes = [1, 96], strides = [1, 1]} : vector<8x128xf32> to vector<1x96xf32>
    %8 = vector.broadcast %7 : vector<1x96xf32> to vector<32x96xf32>
    %9 = arith.addf %6, %8 : vector<32x96xf32>
    %10 = vector.extract_strided_slice %9 {offsets = [0, 0], sizes = [16, 32], strides = [1, 1]} : vector<32x96xf32> to vector<16x32xf32>
    %11 = vector.extract_strided_slice %9 {offsets = [0, 32], sizes = [16, 32], strides = [1, 1]} : vector<32x96xf32> to vector<16x32xf32>
    %12 = vector.extract_strided_slice %9 {offsets = [16, 64], sizes = [16, 32], strides = [1, 1]} : vector<32x96xf32> to vector<16x32xf32>
    %c0_7 = arith.constant 0 : index
    %c0_8 = arith.constant 0 : index
    %13 = vector.load %arg3[%c0_7, %c0_8] : memref<16x16xf32, #tpu.memory_space<vmem>>, vector<16x16xf32>
    %14 = vector.extract_strided_slice %10 {offsets = [0, 0], sizes = [16, 8], strides = [1, 1]} : vector<16x32xf32> to vector<16x8xf32>
    %15 = vector.extract_strided_slice %11 {offsets = [0, 0], sizes = [16, 8], strides = [1, 1]} : vector<16x32xf32> to vector<16x8xf32>
    %16 = vector.extract_strided_slice %12 {offsets = [0, 0], sizes = [16, 8], strides = [1, 1]} : vector<16x32xf32> to vector<16x8xf32>
    %cst_9 = arith.constant dense<0.000000e+00> : vector<16x16xf32>
    %17 = tpu.matmul %14, %15, %cst_9 {dimension_numbers = #tpu.dot_dimension_numbers<[1], [1], [0], [0], [0, 0, 1, 0], [], []>} : vector<16x8xf32>, vector<16x8xf32>, vector<16x16xf32> -> vector<16x16xf32>
    %18 = arith.addf %17, %13 : vector<16x16xf32>
    %cst_10 = arith.constant dense<0xFF800000> : vector<16xf32>
    %19 = vector.multi_reduction <maximumf>, %18, %cst_10 [1] : vector<16x16xf32> to vector<16xf32>
    %20 = vector.shape_cast %19 : vector<16xf32> to vector<16x1xf32>
    %21 = vector.broadcast %20 : vector<16x1xf32> to vector<16x16xf32>
    %22 = arith.subf %18, %21 : vector<16x16xf32>
    %23 = math.exp %22 : vector<16x16xf32>
    %cst_11 = arith.constant dense<0.000000e+00> : vector<16xf32>
    %24 = vector.multi_reduction <add>, %23, %cst_11 [1] : vector<16x16xf32> to vector<16xf32>
    %25 = vector.shape_cast %24 : vector<16xf32> to vector<16x1xf32>
    %26 = tpu.reciprocal %25 {approx = true} : vector<16x1xf32> -> vector<16x1xf32>
    %27 = vector.broadcast %26 : vector<16x1xf32> to vector<16x16xf32>
    %28 = arith.mulf %23, %27 : vector<16x16xf32>
    %cst_12 = arith.constant dense<0.000000e+00> : vector<16x8xf32>
    %29 = tpu.matmul %28, %16, %cst_12 {dimension_numbers = #tpu.dot_dimension_numbers<[1], [0], [0], [1], [0, 0, 1, 1], [], []>} : vector<16x16xf32>, vector<16x8xf32>, vector<16x8xf32> -> vector<16x8xf32>
    %30 = vector.extract_strided_slice %10 {offsets = [0, 8], sizes = [16, 8], strides = [1, 1]} : vector<16x32xf32> to vector<16x8xf32>
    %31 = vector.extract_strided_slice %11 {offsets = [0, 8], sizes = [16, 8], strides = [1, 1]} : vector<16x32xf32> to vector<16x8xf32>
    %32 = vector.extract_strided_slice %12 {offsets = [0, 8], sizes = [16, 8], strides = [1, 1]} : vector<16x32xf32> to vector<16x8xf32>
    %cst_13 = arith.constant dense<0.000000e+00> : vector<16x16xf32>
    %33 = tpu.matmul %30, %31, %cst_13 {dimension_numbers = #tpu.dot_dimension_numbers<[1], [1], [0], [0], [0, 0, 1, 0], [], []>} : vector<16x8xf32>, vector<16x8xf32>, vector<16x16xf32> -> vector<16x16xf32>
    %34 = arith.addf %33, %13 : vector<16x16xf32>
    %cst_14 = arith.constant dense<0xFF800000> : vector<16xf32>
    %35 = vector.multi_reduction <maximumf>, %34, %cst_14 [1] : vector<16x16xf32> to vector<16xf32>
    %36 = vector.shape_cast %35 : vector<16xf32> to vector<16x1xf32>
    %37 = vector.broadcast %36 : vector<16x1xf32> to vector<16x16xf32>
    %38 = arith.subf %34, %37 : vector<16x16xf32>
    %39 = math.exp %38 : vector<16x16xf32>
    %cst_15 = arith.constant dense<0.000000e+00> : vector<16xf32>
    %40 = vector.multi_reduction <add>, %39, %cst_15 [1] : vector<16x16xf32> to vector<16xf32>
    %41 = vector.shape_cast %40 : vector<16xf32> to vector<16x1xf32>
    %42 = tpu.reciprocal %41 {approx = true} : vector<16x1xf32> -> vector<16x1xf32>
    %43 = vector.broadcast %42 : vector<16x1xf32> to vector<16x16xf32>
    %44 = arith.mulf %39, %43 : vector<16x16xf32>
    %cst_16 = arith.constant dense<0.000000e+00> : vector<16x8xf32>
    %45 = tpu.matmul %44, %32, %cst_16 {dimension_numbers = #tpu.dot_dimension_numbers<[1], [0], [0], [1], [0, 0, 1, 1], [], []>} : vector<16x16xf32>, vector<16x8xf32>, vector<16x8xf32> -> vector<16x8xf32>
    %46 = vector.extract_strided_slice %10 {offsets = [0, 16], sizes = [16, 8], strides = [1, 1]} : vector<16x32xf32> to vector<16x8xf32>
    %47 = vector.extract_strided_slice %11 {offsets = [0, 16], sizes = [16, 8], strides = [1, 1]} : vector<16x32xf32> to vector<16x8xf32>
    %48 = vector.extract_strided_slice %12 {offsets = [0, 16], sizes = [16, 8], strides = [1, 1]} : vector<16x32xf32> to vector<16x8xf32>
    %cst_17 = arith.constant dense<0.000000e+00> : vector<16x16xf32>
    %49 = tpu.matmul %46, %47, %cst_17 {dimension_numbers = #tpu.dot_dimension_numbers<[1], [1], [0], [0], [0, 0, 1, 0], [], []>} : vector<16x8xf32>, vector<16x8xf32>, vector<16x16xf32> -> vector<16x16xf32>
    %50 = arith.addf %49, %13 : vector<16x16xf32>
    %cst_18 = arith.constant dense<0xFF800000> : vector<16xf32>
    %51 = vector.multi_reduction <maximumf>, %50, %cst_18 [1] : vector<16x16xf32> to vector<16xf32>
    %52 = vector.shape_cast %51 : vector<16xf32> to vector<16x1xf32>
    %53 = vector.broadcast %52 : vector<16x1xf32> to vector<16x16xf32>
    %54 = arith.subf %50, %53 : vector<16x16xf32>
    %55 = math.exp %54 : vector<16x16xf32>
    %cst_19 = arith.constant dense<0.000000e+00> : vector<16xf32>
    %56 = vector.multi_reduction <add>, %55, %cst_19 [1] : vector<16x16xf32> to vector<16xf32>
    %57 = vector.shape_cast %56 : vector<16xf32> to vector<16x1xf32>
    %58 = tpu.reciprocal %57 {approx = true} : vector<16x1xf32> -> vector<16x1xf32>
    %59 = vector.broadcast %58 : vector<16x1xf32> to vector<16x16xf32>
    %60 = arith.mulf %55, %59 : vector<16x16xf32>
    %cst_20 = arith.constant dense<0.000000e+00> : vector<16x8xf32>
    %61 = tpu.matmul %60, %48, %cst_20 {dimension_numbers = #tpu.dot_dimension_numbers<[1], [0], [0], [1], [0, 0, 1, 1], [], []>} : vector<16x16xf32>, vector<16x8xf32>, vector<16x8xf32> -> vector<16x8xf32>
    %62 = vector.extract_strided_slice %10 {offsets = [0, 24], sizes = [16, 8], strides = [1, 1]} : vector<16x32xf32> to vector<16x8xf32>
    %63 = vector.extract_strided_slice %11 {offsets = [0, 24], sizes = [16, 8], strides = [1, 1]} : vector<16x32xf32> to vector<16x8xf32>
    %64 = vector.extract_strided_slice %12 {offsets = [0, 24], sizes = [16, 8], strides = [1, 1]} : vector<16x32xf32> to vector<16x8xf32>
    %cst_21 = arith.constant dense<0.000000e+00> : vector<16x16xf32>
    %65 = tpu.matmul %62, %63, %cst_21 {dimension_numbers = #tpu.dot_dimension_numbers<[1], [1], [0], [0], [0, 0, 1, 0], [], []>} : vector<16x8xf32>, vector<16x8xf32>, vector<16x16xf32> -> vector<16x16xf32>
    %66 = arith.addf %65, %13 : vector<16x16xf32>
    %cst_22 = arith.constant dense<0xFF800000> : vector<16xf32>
    %67 = vector.multi_reduction <maximumf>, %66, %cst_22 [1] : vector<16x16xf32> to vector<16xf32>
    %68 = vector.shape_cast %67 : vector<16xf32> to vector<16x1xf32>
    %69 = vector.broadcast %68 : vector<16x1xf32> to vector<16x16xf32>
    %70 = arith.subf %66, %69 : vector<16x16xf32>
    %71 = math.exp %70 : vector<16x16xf32>
    %cst_23 = arith.constant dense<0.000000e+00> : vector<16xf32>
    %72 = vector.multi_reduction <add>, %71, %cst_23 [1] : vector<16x16xf32> to vector<16xf32>
    %73 = vector.shape_cast %72 : vector<16xf32> to vector<16x1xf32>
    %74 = tpu.reciprocal %73 {approx = true} : vector<16x1xf32> -> vector<16x1xf32>
    %75 = vector.broadcast %74 : vector<16x1xf32> to vector<16x16xf32>
    %76 = arith.mulf %71, %75 : vector<16x16xf32>
    %cst_24 = arith.constant dense<0.000000e+00> : vector<16x8xf32>
    %77 = tpu.matmul %76, %64, %cst_24 {dimension_numbers = #tpu.dot_dimension_numbers<[1], [0], [0], [1], [0, 0, 1, 1], [], []>} : vector<16x16xf32>, vector<16x8xf32>, vector<16x8xf32> -> vector<16x8xf32>
    %78 = tpu.concatenate %29, %45, %61, %77 in 1 : vector<16x8xf32>, vector<16x8xf32>, vector<16x8xf32>, vector<16x8xf32> -> vector<16x32xf32>
    %c0_25 = arith.constant 0 : index
    %c0_26 = arith.constant 0 : index
    %79 = vector.load %arg5[%c0_25, %c0_26] : memref<32x32xf32, #tpu.memory_space<vmem>>, vector<32x32xf32>
    %cst_27 = arith.constant dense<0.000000e+00> : vector<16x32xf32>
    %80 = tpu.matmul %78, %79, %cst_27 {dimension_numbers = #tpu.dot_dimension_numbers<[1], [0], [0], [1], [0, 0, 1, 1], [], []>} : vector<16x32xf32>, vector<32x32xf32>, vector<16x32xf32> -> vector<16x32xf32>
    %81 = vector.extract_strided_slice %3 {offsets = [1, 0], sizes = [1, 32], strides = [1, 1]} : vector<8x128xf32> to vector<1x32xf32>
    %82 = vector.broadcast %81 : vector<1x32xf32> to vector<16x32xf32>
    %83 = arith.addf %80, %82 : vector<16x32xf32>
    %84 = arith.addf %0, %83 : vector<16x32xf32>
    %cst_28 = arith.constant dense<0.000000e+00> : vector<16xf32>
    %85 = vector.multi_reduction <add>, %84, %cst_28 [1] : vector<16x32xf32> to vector<16xf32>
    %86 = vector.shape_cast %85 : vector<16xf32> to vector<16x1xf32>
    %cst_29 = arith.constant 3.200000e+01 : f32
    %87 = vector.broadcast %cst_29 : f32 to vector<16x1xf32>
    %88 = arith.divf %86, %87 : vector<16x1xf32>
    %89 = vector.broadcast %88 : vector<16x1xf32> to vector<16x32xf32>
    %90 = arith.subf %84, %89 : vector<16x32xf32>
    %91 = arith.mulf %90, %90 : vector<16x32xf32>
    %cst_30 = arith.constant dense<0.000000e+00> : vector<16xf32>
    %92 = vector.multi_reduction <add>, %91, %cst_30 [1] : vector<16x32xf32> to vector<16xf32>
    %93 = vector.shape_cast %92 : vector<16xf32> to vector<16x1xf32>
    %cst_31 = arith.constant 3.200000e+01 : f32
    %94 = vector.broadcast %cst_31 : f32 to vector<16x1xf32>
    %95 = arith.divf %93, %94 : vector<16x1xf32>
    %96 = vector.broadcast %88 : vector<16x1xf32> to vector<16x32xf32>
    %97 = arith.subf %84, %96 : vector<16x32xf32>
    %cst_32 = arith.constant 9.99999974E-6 : f32
    %98 = vector.broadcast %cst_32 : f32 to vector<16x1xf32>
    %99 = arith.addf %95, %98 : vector<16x1xf32>
    %100 = math.rsqrt %99 : vector<16x1xf32>
    %101 = vector.broadcast %100 : vector<16x1xf32> to vector<16x32xf32>
    %102 = arith.mulf %97, %101 : vector<16x32xf32>
    %103 = vector.extract_strided_slice %3 {offsets = [4, 0], sizes = [1, 32], strides = [1, 1]} : vector<8x128xf32> to vector<1x32xf32>
    %104 = vector.broadcast %103 : vector<1x32xf32> to vector<16x32xf32>
    %105 = arith.mulf %102, %104 : vector<16x32xf32>
    %106 = vector.extract_strided_slice %3 {offsets = [5, 0], sizes = [1, 32], strides = [1, 1]} : vector<8x128xf32> to vector<1x32xf32>
    %107 = vector.broadcast %106 : vector<1x32xf32> to vector<16x32xf32>
    %108 = arith.addf %105, %107 : vector<16x32xf32>
    %c0_33 = arith.constant 0 : index
    %c0_34 = arith.constant 0 : index
    %109 = vector.load %arg6[%c0_33, %c0_34] : memref<32x64xf32, #tpu.memory_space<vmem>>, vector<32x64xf32>
    %cst_35 = arith.constant dense<0.000000e+00> : vector<16x64xf32>
    %110 = tpu.matmul %108, %109, %cst_35 {dimension_numbers = #tpu.dot_dimension_numbers<[1], [0], [0], [1], [0, 0, 1, 1], [], []>} : vector<16x32xf32>, vector<32x64xf32>, vector<16x64xf32> -> vector<16x64xf32>
    %111 = vector.extract_strided_slice %3 {offsets = [2, 0], sizes = [1, 64], strides = [1, 1]} : vector<8x128xf32> to vector<1x64xf32>
    %112 = vector.broadcast %111 : vector<1x64xf32> to vector<16x64xf32>
    %113 = arith.addf %110, %112 : vector<16x64xf32>
    %cst_36 = arith.constant 0.000000e+00 : f32
    %114 = vector.broadcast %cst_36 : f32 to vector<16x64xf32>
    %115 = arith.maximumf %113, %114 : vector<16x64xf32>
    %c0_37 = arith.constant 0 : index
    %c0_38 = arith.constant 0 : index
    %116 = vector.load %arg7[%c0_37, %c0_38] : memref<64x32xf32, #tpu.memory_space<vmem>>, vector<64x32xf32>
    %cst_39 = arith.constant dense<0.000000e+00> : vector<16x32xf32>
    %117 = tpu.matmul %115, %116, %cst_39 {dimension_numbers = #tpu.dot_dimension_numbers<[1], [0], [0], [1], [0, 0, 1, 1], [], []>} : vector<16x64xf32>, vector<64x32xf32>, vector<16x32xf32> -> vector<16x32xf32>
    %118 = vector.extract_strided_slice %3 {offsets = [3, 0], sizes = [1, 32], strides = [1, 1]} : vector<8x128xf32> to vector<1x32xf32>
    %119 = vector.broadcast %118 : vector<1x32xf32> to vector<16x32xf32>
    %120 = arith.addf %117, %119 : vector<16x32xf32>
    %121 = arith.addf %108, %120 : vector<16x32xf32>
    %cst_40 = arith.constant dense<0.000000e+00> : vector<16xf32>
    %122 = vector.multi_reduction <add>, %121, %cst_40 [1] : vector<16x32xf32> to vector<16xf32>
    %123 = vector.shape_cast %122 : vector<16xf32> to vector<16x1xf32>
    %cst_41 = arith.constant 3.200000e+01 : f32
    %124 = vector.broadcast %cst_41 : f32 to vector<16x1xf32>
    %125 = arith.divf %123, %124 : vector<16x1xf32>
    %126 = vector.broadcast %125 : vector<16x1xf32> to vector<16x32xf32>
    %127 = arith.subf %121, %126 : vector<16x32xf32>
    %128 = arith.mulf %127, %127 : vector<16x32xf32>
    %cst_42 = arith.constant dense<0.000000e+00> : vector<16xf32>
    %129 = vector.multi_reduction <add>, %128, %cst_42 [1] : vector<16x32xf32> to vector<16xf32>
    %130 = vector.shape_cast %129 : vector<16xf32> to vector<16x1xf32>
    %cst_43 = arith.constant 3.200000e+01 : f32
    %131 = vector.broadcast %cst_43 : f32 to vector<16x1xf32>
    %132 = arith.divf %130, %131 : vector<16x1xf32>
    %133 = vector.broadcast %125 : vector<16x1xf32> to vector<16x32xf32>
    %134 = arith.subf %121, %133 : vector<16x32xf32>
    %cst_44 = arith.constant 9.99999974E-6 : f32
    %135 = vector.broadcast %cst_44 : f32 to vector<16x1xf32>
    %136 = arith.addf %132, %135 : vector<16x1xf32>
    %137 = math.rsqrt %136 : vector<16x1xf32>
    %138 = vector.broadcast %137 : vector<16x1xf32> to vector<16x32xf32>
    %139 = arith.mulf %134, %138 : vector<16x32xf32>
    %140 = vector.extract_strided_slice %3 {offsets = [6, 0], sizes = [1, 32], strides = [1, 1]} : vector<8x128xf32> to vector<1x32xf32>
    %141 = vector.broadcast %140 : vector<1x32xf32> to vector<16x32xf32>
    %142 = arith.mulf %139, %141 : vector<16x32xf32>
    %143 = vector.extract_strided_slice %3 {offsets = [7, 0], sizes = [1, 32], strides = [1, 1]} : vector<8x128xf32> to vector<1x32xf32>
    %144 = vector.broadcast %143 : vector<1x32xf32> to vector<16x32xf32>
    %145 = arith.addf %142, %144 : vector<16x32xf32>
    %c0_45 = arith.constant 0 : index
    %c0_46 = arith.constant 0 : index
    %146 = vector.load %arg9[%c0_45, %c0_46] : memref<16x32xf32, #tpu.memory_space<vmem>>, vector<16x32xf32>
    tpu.vector_store %arg9[%c0_45, %c0_46], %145 {strides = array<i32>} : memref<16x32xf32, #tpu.memory_space<vmem>>, vector<16x32xf32>,
    return
  }
  func.func @transform_0(%arg0: i32) -> (i32, i32) {
    %c0_i32 = arith.constant 0 : i32
    %c0_i32_0 = arith.constant 0 : i32
    %c0_i32_1 = arith.constant 0 : i32
    return %c0_i32, %c0_i32_0 : i32, i32
  }
  func.func @transform_1(%arg0: i32) -> (i32, i32) {
    %c0_i32 = arith.constant 0 : i32
    %c0_i32_0 = arith.constant 0 : i32
    %c0_i32_1 = arith.constant 0 : i32
    return %c0_i32, %c0_i32_0 : i32, i32
  }
  func.func @transform_2(%arg0: i32) -> (i32, i32) {
    %c0_i32 = arith.constant 0 : i32
    %c0_i32_0 = arith.constant 0 : i32
    %c0_i32_1 = arith.constant 0 : i32
    return %c0_i32, %c0_i32_0 : i32, i32
  }
  func.func @transform_3(%arg0: i32) -> (i32, i32) {
    %c0_i32 = arith.constant 0 : i32
    %c0_i32_0 = arith.constant 0 : i32
    %c0_i32_1 = arith.constant 0 : i32
    return %c0_i32, %c0_i32_0 : i32, i32
  }
  func.func @transform_4(%arg0: i32) -> (i32, i32) {
    %c0_i32 = arith.constant 0 : i32
    %c0_i32_0 = arith.constant 0 : i32
    %c0_i32_1 = arith.constant 0 : i32
    return %c0_i32, %c0_i32_0 : i32, i32
  }
  func.func @transform_5(%arg0: i32) -> (i32, i32) {
    %c0_i32 = arith.constant 0 : i32
    %c0_i32_0 = arith.constant 0 : i32
    %c0_i32_1 = arith.constant 0 : i32
    return %c0_i32, %c0_i32_0 : i32, i32
  }
  func.func @transform_6(%arg0: i32) -> (i32, i32) {
    %c0_i32 = arith.constant 0 : i32
    %c0_i32_0 = arith.constant 0 : i32
    %c0_i32_1 = arith.constant 0 : i32
    return %c0_i32, %c0_i32_0 : i32, i32
  }
  func.func @transform_7(%arg0: i32) -> (i32, i32) {
    %c0_i32 = arith.constant 0 : i32
    %c0_i32_0 = arith.constant 0 : i32
    %c0_i32_1 = arith.constant 0 : i32
    return %c0_i32, %c0_i32_0 : i32, i32
  }
  func.func @transform_8(%arg0: i32) -> (i32, i32) {
    %c0_i32 = arith.constant 0 : i32
    %c0_i32_0 = arith.constant 0 : i32
    %c0_i32_1 = arith.constant 0 : i32
    return %c0_i32, %c0_i32_0 : i32, i32
  }
}

</mosaic_0001>

<llo_original>
// kernel: tpu_custom_call.1
$region0: #{tpu_custom_call.1}
  #allocation0 [shape = 'u32[]', space=smem, size = 0x4, offset = 0x4, fixed_abs, tag = 'smem constant byte address 0x4 - core index']
  #allocation1 [shape = 'u32[72,128]{1,0:T(1,128)}', space=vmem, size = 0x9000, scoped, tag = 'internal scratch']
  %s0 = inlined_call_operand.hbm [shape: f32[16,32], index: 0, kind: input, shape index: {}]
  %s1 = inlined_call_operand.hbm [shape: f32[16,32], index: 1, kind: input, shape index: {}]
  %s2 = inlined_call_operand.hbm [shape: f32[16,16], index: 2, kind: input, shape index: {}]
  %s3 = inlined_call_operand.vmem [shape: f32[32,96], index: 3, kind: input, shape index: {}]
  %s4 = inlined_call_operand.vmem [shape: f32[32,32], index: 4, kind: input, shape index: {}]
  %s5 = inlined_call_operand.vmem [shape: f32[32,64], index: 5, kind: input, shape index: {}]
  %s6 = inlined_call_operand.vmem [shape: f32[64,32], index: 6, kind: input, shape index: {}]
  %s7 = inlined_call_operand.hbm [shape: f32[8,128], index: 7, kind: input, shape index: {}]
  %s8 = inlined_call_operand.hbm [shape: f32[16,32], index: 8, kind: output, shape index: {}]
  %s9 = sld [smem:[#allocation0]]
  $region58: #{tpu_custom_call.1} parent=0
    _
  %s11 = ssub.s32 1, %s9
  %s12 = scalar_select 0, %s11, %s9
  $region1: #{tpu_custom_call.1} parent=0
    #allocation2 [shape = 'u8[8192]{0}', space=vmem, size = 0x2000, scoped, tag = 'input window, operand 0, single buffered']
    #allocation3 [shape = 's32[1]{0}', space=sflag, size = 0x4, scoped, tag = 'scoped memory for tpu_custom_call.1']
    #allocation4 [shape = 's32[1]{0}', space=sflag, size = 0x4, scoped, tag = 'scoped memory for tpu_custom_call.1']
    #allocation5 [shape = 'u8[8192]{0}', space=vmem, size = 0x2000, scoped, tag = 'input window, operand 1, single buffered']
    #allocation6 [shape = 's32[1]{0}', space=sflag, size = 0x4, scoped, tag = 'scoped memory for tpu_custom_call.1']
    #allocation7 [shape = 'u8[8192]{0}', space=vmem, size = 0x2000, scoped, tag = 'input window, operand 2, single buffered']
    #allocation8 [shape = 'u8[4096]{0}', space=vmem, size = 0x1000, scoped, tag = 'input window, operand 7, single buffered']
    #allocation9 [shape = 's32[1]{0}', space=sflag, size = 0x4, scoped, tag = 'scoped memory for tpu_custom_call.1']
    #allocation10 [shape = 'u8[8192]{0}', space=vmem, size = 0x2000, scoped, tag = 'output window, operand 0, single buffered']
    %13 = vsyncpa [#allocation3], 0
    %14 = vsyncpa [#allocation6], 0
    %15 = vsyncpa [#allocation9], 0
    %16 = vsyncpa [#allocation4], 0
    // Predicated region
    $region2: #{tpu_custom_call.1} parent=1 // pred_check
      _
    $region3: #{tpu_custom_call.1} parent=1 // pred_check_branch
      %18 = sbr.rel (0) target = $region5
    $region4: #{tpu_custom_call.1} parent=1 // pred_region
      %20 = vsyncadd [#allocation3], 0
      %s21 = sshll.u32 %s0, 4
      %s22 = int_to_ptr.hbm [resolvable:$true] %s21
      %s23 = sshll.u32 [#allocation2], 4
      %s24 = int_to_ptr.vmem [resolvable:$true] %s23
      %29 = dma.hbm_to_vmem [thread:$0]  %s22, 256, %s24, [#allocation3], 128, 128, 8
    $region5: #{tpu_custom_call.1} parent=1 // pred_fallthru
      _
    // Predicated region
    $region6: #{tpu_custom_call.1} parent=1 // pred_check
      _
    $region7: #{tpu_custom_call.1} parent=1 // pred_check_branch
      %31 = sbr.rel (0) target = $region9
    $region8: #{tpu_custom_call.1} parent=1 // pred_region
      %33 = vsyncadd [#allocation6], 0
      %s34 = sshll.u32 %s1, 4
      %s35 = int_to_ptr.hbm [resolvable:$true] %s34
      %s36 = sshll.u32 [#allocation5], 4
      %s37 = int_to_ptr.vmem [resolvable:$true] %s36
      %42 = dma.hbm_to_vmem [thread:$0]  %s35, 256, %s37, [#allocation6], 128, 128, 8
    $region9: #{tpu_custom_call.1} parent=1 // pred_fallthru
      _
    // Predicated region
    $region10: #{tpu_custom_call.1} parent=1 // pred_check
      _
    $region11: #{tpu_custom_call.1} parent=1 // pred_check_branch
      %44 = sbr.rel (0) target = $region13
    $region12: #{tpu_custom_call.1} parent=1 // pred_region
      %46 = vsyncadd [#allocation6], 0
      %s47 = sshll.u32 %s2, 4
      %s48 = int_to_ptr.hbm [resolvable:$true] %s47
      %s49 = sshll.u32 [#allocation7], 4
      %s50 = int_to_ptr.vmem [resolvable:$true] %s49
      %55 = dma.hbm_to_vmem [thread:$0]  %s48, 256, %s50, [#allocation6], 128, 128, 8
    $region13: #{tpu_custom_call.1} parent=1 // pred_fallthru
      _
    // Predicated region
    $region14: #{tpu_custom_call.1} parent=1 // pred_check
      _
    $region15: #{tpu_custom_call.1} parent=1 // pred_check_branch
      %57 = sbr.rel (0) target = $region17
    $region16: #{tpu_custom_call.1} parent=1 // pred_region
      _
    $region17: #{tpu_custom_call.1} parent=1 // pred_fallthru
      _
    // Predicated region
    $region18: #{tpu_custom_call.1} parent=1 // pred_check
      _
    $region19: #{tpu_custom_call.1} parent=1 // pred_check_branch
      %59 = sbr.rel (0) target = $region21
    $region20: #{tpu_custom_call.1} parent=1 // pred_region
      _
    $region21: #{tpu_custom_call.1} parent=1 // pred_fallthru
      _
    // Predicated region
    $region22: #{tpu_custom_call.1} parent=1 // pred_check
      _
    $region23: #{tpu_custom_call.1} parent=1 // pred_check_branch
      %61 = sbr.rel (0) target = $region25
    $region24: #{tpu_custom_call.1} parent=1 // pred_region
      _
    $region25: #{tpu_custom_call.1} parent=1 // pred_fallthru
      _
    // Predicated region
    $region26: #{tpu_custom_call.1} parent=1 // pred_check
      _
    $region27: #{tpu_custom_call.1} parent=1 // pred_check_branch
      %63 = sbr.rel (0) target = $region29
    $region28: #{tpu_custom_call.1} parent=1 // pred_region
      _
    $region29: #{tpu_custom_call.1} parent=1 // pred_fallthru
      _
    // Predicated region
    $region30: #{tpu_custom_call.1} parent=1 // pred_check
      _
    $region31: #{tpu_custom_call.1} parent=1 // pred_check_branch
      %65 = sbr.rel (0) target = $region33
    $region32: #{tpu_custom_call.1} parent=1 // pred_region
      %67 = vsyncadd [#allocation9], 0
      %s69 = sshll.u32 %s7, 4
      %s70 = int_to_ptr.hbm [resolvable:$true] %s69
      %s71 = sshll.u32 [#allocation8], 4
      %s72 = int_to_ptr.vmem [resolvable:$true] %s71
      %74 = dma.hbm_to_vmem [thread:$0]  %s70, 128, %s72, [#allocation9]
    $region33: #{tpu_custom_call.1} parent=1 // pred_fallthru
      _
    // Predicated region
    $region34: #{tpu_custom_call.1} parent=1 // pred_check
      _
    $region35: #{tpu_custom_call.1} parent=1 // pred_check_branch
      %76 = sbr.rel (0) target = $region37
    $region36: #{tpu_custom_call.1} parent=1 // pred_region
      %78 = dma.done [#allocation3], 256
    $region37: #{tpu_custom_call.1} parent=1 // pred_fallthru
      _
    // Predicated region
    $region38: #{tpu_custom_call.1} parent=1 // pred_check
      _
    $region39: #{tpu_custom_call.1} parent=1 // pred_check_branch
      %80 = sbr.rel (0) target = $region41
    $region40: #{tpu_custom_call.1} parent=1 // pred_region
      %82 = dma.done [#allocation6], 256
    $region41: #{tpu_custom_call.1} parent=1 // pred_fallthru
      _
    // Predicated region
    $region42: #{tpu_custom_call.1} parent=1 // pred_check
      _
    $region43: #{tpu_custom_call.1} parent=1 // pred_check_branch
      %84 = sbr.rel (0) target = $region45
    $region44: #{tpu_custom_call.1} parent=1 // pred_region
      %86 = dma.done [#allocation6], 256
    $region45: #{tpu_custom_call.1} parent=1 // pred_fallthru
      _
    // Predicated region
    $region46: #{tpu_custom_call.1} parent=1 // pred_check
      _
    $region47: #{tpu_custom_call.1} parent=1 // pred_check_branch
      %88 = sbr.rel (0) target = $region49
    $region48: #{tpu_custom_call.1} parent=1 // pred_region
      %90 = dma.done [#allocation9], 128
    $region49: #{tpu_custom_call.1} parent=1 // pred_fallthru
      _
    %v91 = vld [vmem:[#allocation2] sm:$0xff]
    %v92 = vld [vmem:[#allocation2 + $0x8] sm:$0xff]
    %v93 = vld [vmem:[#allocation5] sm:$0xff]
    %v94 = vld [vmem:[#allocation5 + $0x8] sm:$0xff]
    %v95 = vadd.f32 %v91, %v93
    %v96 = vadd.f32 %v92, %v94
    %v97 = vld [vmem:[#allocation8] sm:$0xff]
    %v98 = vld [vmem:[%s3] sm:$0xff]
    %v99 = vld [vmem:[%s3 + $0x8] sm:$0xff]
    %v100 = vld [vmem:[%s3 + $0x10] sm:$0xff]
    %v101 = vld [vmem:[%s3 + $0x18] sm:$0xff]
    %v102 = vperm.slane %v97, 0
    %vm103 = vcmask 261120
    %v105 = vsel %vm103, %v95, 0
    %v108 = vsel %vm103, %v96, 0
    %v111 = vsel %vm103, %v91, 0
    %v114 = vsel %vm103, %v92, 0
    %116 = vmatpush.msra.mxu0 0.0
    %117 = vmatpush.msra.mxu0 0.0
    %118 = vmatpush.msra.mxu0 0.0
    %119 = vmatpush.msra.mxu0 0.0
    %120 = vmatpush.msra.mxu0 0.0
    %121 = vmatpush.msra.mxu0 0.0
    %122 = vmatpush.msra.mxu0 0.0
    %123 = vmatpush.msra.mxu0 0.0
    %124 = vmatpush.msra.mxu0 0.0
    %125 = vmatpush.msra.mxu0 0.0
    %126 = vmatpush.msra.mxu0 0.0
    %127 = vmatpush.msra.mxu0 0.0
    %128 = vmatpush.msra.mxu0 %v101
    %129 = vmatpush.msra.mxu0 %v100
    %130 = vmatpush.msra.mxu0 %v99
    %131 = vmatpush.msra.mxu0 %v98
    %132 = vmatmul.f32.gmra.mxu0 %v105
    %v133 = vpop.f32.mrf.mxu0
    %v134 = vadd.f32 %v102, %v133
    %135 = vmatmul.f32.gmra.mxu0 %v108
    %v136 = vpop.f32.mrf.mxu0
    %v137 = vadd.f32 %v102, %v136
    %138 = vmatmul.f32.gmra.mxu0 %v111
    %v139 = vpop.f32.mrf.mxu0
    %v140 = vadd.f32 %v102, %v139
    %141 = vmatmul.f32.gmra.mxu0 %v114
    %v142 = vpop.f32.mrf.mxu0
    %v143 = vadd.f32 %v102, %v142
    %144 = vdwg.mxu0
    %v145 = vld [vmem:[#allocation7] sm:$0xff]
    %v146 = vld [vmem:[#allocation7 + $0x8] sm:$0xff]
    %149 = vrot.lane.b32.xlu0 %v134, 96
    %v150 = vpop.permute.xlu0 %149
    %151 = vrot.lane.b32.xlu0 %v137, 96
    %v152 = vpop.permute.xlu0 %151
    %vm153 = vcmask 64512
    %v154 = vsel %vm153, %v134, 0
    %v156 = vsel %vm153, %v137, 0
    %v158 = vsel %vm153, %v150, 0
    %v160 = vsel %vm153, %v152, 0
    %162 = vmatpush.xpose.msra.mxu0 0.0
    %163 = vmatpush.xpose.msra.mxu0 0.0
    %164 = vmatpush.xpose.msra.mxu0 0.0
    %165 = vmatpush.xpose.msra.mxu0 0.0
    %166 = vmatpush.xpose.msra.mxu0 0.0
    %167 = vmatpush.xpose.msra.mxu0 0.0
    %168 = vmatpush.xpose.msra.mxu0 0.0
    %169 = vmatpush.xpose.msra.mxu0 0.0
    %170 = vmatpush.xpose.msra.mxu0 0.0
    %171 = vmatpush.xpose.msra.mxu0 0.0
    %172 = vmatpush.xpose.msra.mxu0 0.0
    %173 = vmatpush.xpose.msra.mxu0 0.0
    %174 = vmatpush.xpose.msra.mxu0 0.0
    %175 = vmatpush.xpose.msra.mxu0 0.0
    %176 = vmatpush.xpose.msra.mxu0 %v160
    %177 = vmatpush.xpose.msra.mxu0 %v158
    %178 = vmatmul.f32.gmra.mxu0 %v154
    %v179 = vpop.f32.mrf.mxu0
    %v180 = vadd.f32 %v145, %v179
    %181 = vmatmul.f32.gmra.mxu0 %v156
    %v182 = vpop.f32.mrf.mxu0
    %v183 = vadd.f32 %v146, %v182
    %184 = vdwg.mxu0
    %vm185 = vcmask 130048
    %v186 = vsel %vm185, %v180, -inf
    %187 = vmax.xlane.f32.xlu0 %v186
    %v188 = vpop.xlane.xlu0 %187
    %v189 = vsel %vm185, %v183, -inf
    %190 = vmax.xlane.f32.xlu0 %v189
    %v191 = vpop.xlane.xlu0 %190
    %v192 = vsub.f32 %v180, %v188
    %v193 = vsub.f32 %v183, %v191
    %v194 = vmul.f32 %v192, 1.442695
    %v195 = vpow.pop %v194
    %v196 = vmul.f32 %v193, 1.442695
    %v197 = vpow.pop %v196
    %v198 = vsel %vm185, %v195, 0.0
    %199 = vadd.xlane.f32.xlu0 %v198
    %v200 = vpop.xlane.xlu0 %199
    %v201 = vsel %vm185, %v197, 0.0
    %202 = vadd.xlane.f32.xlu0 %v201
    %v203 = vpop.xlane.xlu0 %202
    %v204 = vrcp.pop %v200
    %v205 = vrcp.pop %v203
    %v206 = vmul.f32 %v195, %v204
    %v207 = vmul.f32 %v197, %v205
    %210 = vrot.lane.b32.xlu0 %v140, 64
    %v211 = vpop.permute.xlu0 %210
    %212 = vrot.lane.b32.xlu0 %v143, 64
    %v213 = vpop.permute.xlu0 %212
    %v217 = vsel %vm185, %v206, 0
    %v220 = vsel %vm185, %v207, 0
    %222 = vmatpush.msra.mxu0 0.0
    %223 = vmatpush.msra.mxu0 0.0
    %224 = vmatpush.msra.mxu0 0.0
    %225 = vmatpush.msra.mxu0 0.0
    %226 = vmatpush.msra.mxu0 0.0
    %227 = vmatpush.msra.mxu0 0.0
    %228 = vmatpush.msra.mxu0 0.0
    %229 = vmatpush.msra.mxu0 0.0
    %230 = vmatpush.msra.mxu0 0.0
    %231 = vmatpush.msra.mxu0 0.0
    %232 = vmatpush.msra.mxu0 0.0
    %233 = vmatpush.msra.mxu0 0.0
    %234 = vmatpush.msra.mxu0 0.0
    %235 = vmatpush.msra.mxu0 0.0
    %236 = vmatpush.msra.mxu0 %v213
    %237 = vmatpush.msra.mxu0 %v211
    %238 = vmatmul.f32.gmra.mxu0 %v217
    %v239 = vpop.f32.mrf.mxu0
    %v240 = vadd.f32 0.0, %v239
    %241 = vmatmul.f32.gmra.mxu0 %v220
    %v242 = vpop.f32.mrf.mxu0
    %v243 = vadd.f32 0.0, %v242
    %244 = vdwg.mxu0
    %245 = vrot.lane.b32.xlu0 %v134, 120
    %v246 = vpop.permute.xlu0 %245
    %247 = vrot.lane.b32.xlu0 %v137, 120
    %v248 = vpop.permute.xlu0 %247
    %249 = vrot.lane.b32.xlu0 %v134, 88
    %v250 = vpop.permute.xlu0 %249
    %251 = vrot.lane.b32.xlu0 %v137, 88
    %v252 = vpop.permute.xlu0 %251
    %v253 = vsel %vm153, %v246, 0
    %v255 = vsel %vm153, %v248, 0
    %v257 = vsel %vm153, %v250, 0
    %v259 = vsel %vm153, %v252, 0
    %261 = vmatpush.xpose.msra.mxu0 0.0
    %262 = vmatpush.xpose.msra.mxu0 0.0
    %263 = vmatpush.xpose.msra.mxu0 0.0
    %264 = vmatpush.xpose.msra.mxu0 0.0
    %265 = vmatpush.xpose.msra.mxu0 0.0
    %266 = vmatpush.xpose.msra.mxu0 0.0
    %267 = vmatpush.xpose.msra.mxu0 0.0
    %268 = vmatpush.xpose.msra.mxu0 0.0
    %269 = vmatpush.xpose.msra.mxu0 0.0
    %270 = vmatpush.xpose.msra.mxu0 0.0
    %271 = vmatpush.xpose.msra.mxu0 0.0
    %272 = vmatpush.xpose.msra.mxu0 0.0
    %273 = vmatpush.xpose.msra.mxu0 0.0
    %274 = vmatpush.xpose.msra.mxu0 0.0
    %275 = vmatpush.xpose.msra.mxu0 %v259
    %276 = vmatpush.xpose.msra.mxu0 %v257
    %277 = vmatmul.f32.gmra.mxu0 %v253
    %v278 = vpop.f32.mrf.mxu0
    %v279 = vadd.f32 %v145, %v278
    %280 = vmatmul.f32.gmra.mxu0 %v255
    %v281 = vpop.f32.mrf.mxu0
    %v282 = vadd.f32 %v146, %v281
    %283 = vdwg.mxu0
    %v284 = vsel %vm185, %v279, -inf
    %285 = vmax.xlane.f32.xlu0 %v284
    %v286 = vpop.xlane.xlu0 %285
    %v287 = vsel %vm185, %v282, -inf
    %288 = vmax.xlane.f32.xlu0 %v287
    %v289 = vpop.xlane.xlu0 %288
    %v290 = vsub.f32 %v279, %v286
    %v291 = vsub.f32 %v282, %v289
    %v292 = vmul.f32 %v290, 1.442695
    %v293 = vpow.pop %v292
    %v294 = vmul.f32 %v291, 1.442695
    %v295 = vpow.pop %v294
    %v296 = vsel %vm185, %v293, 0.0
    %297 = vadd.xlane.f32.xlu0 %v296
    %v298 = vpop.xlane.xlu0 %297
    %v299 = vsel %vm185, %v295, 0.0
    %300 = vadd.xlane.f32.xlu0 %v299
    %v301 = vpop.xlane.xlu0 %300
    %v302 = vrcp.pop %v298
    %v303 = vrcp.pop %v301
    %v304 = vmul.f32 %v293, %v302
    %v305 = vmul.f32 %v295, %v303
    %306 = vrot.lane.b32.xlu0 %v140, 56
    %v307 = vpop.permute.xlu0 %306
    %308 = vrot.lane.b32.xlu0 %v143, 56
    %v309 = vpop.permute.xlu0 %308
    %v313 = vsel %vm185, %v304, 0
    %v316 = vsel %vm185, %v305, 0
    %318 = vmatpush.msra.mxu0 0.0
    %319 = vmatpush.msra.mxu0 0.0
    %320 = vmatpush.msra.mxu0 0.0
    %321 = vmatpush.msra.mxu0 0.0
    %322 = vmatpush.msra.mxu0 0.0
    %323 = vmatpush.msra.mxu0 0.0
    %324 = vmatpush.msra.mxu0 0.0
    %325 = vmatpush.msra.mxu0 0.0
    %326 = vmatpush.msra.mxu0 0.0
    %327 = vmatpush.msra.mxu0 0.0
    %328 = vmatpush.msra.mxu0 0.0
    %329 = vmatpush.msra.mxu0 0.0
    %330 = vmatpush.msra.mxu0 0.0
    %331 = vmatpush.msra.mxu0 0.0
    %332 = vmatpush.msra.mxu0 %v309
    %333 = vmatpush.msra.mxu0 %v307
    %334 = vmatmul.f32.gmra.mxu0 %v313
    %v335 = vpop.f32.mrf.mxu0
    %v336 = vadd.f32 0.0, %v335
    %337 = vmatmul.f32.gmra.mxu0 %v316
    %v338 = vpop.f32.mrf.mxu0
    %v339 = vadd.f32 0.0, %v338
    %340 = vdwg.mxu0
    %341 = vrot.lane.b32.xlu0 %v134, 112
    %v342 = vpop.permute.xlu0 %341
    %343 = vrot.lane.b32.xlu0 %v137, 112
    %v344 = vpop.permute.xlu0 %343
    %345 = vrot.lane.b32.xlu0 %v134, 80
    %v346 = vpop.permute.xlu0 %345
    %347 = vrot.lane.b32.xlu0 %v137, 80
    %v348 = vpop.permute.xlu0 %347
    %v349 = vsel %vm153, %v342, 0
    %v351 = vsel %vm153, %v344, 0
    %v353 = vsel %vm153, %v346, 0
    %v355 = vsel %vm153, %v348, 0
    %357 = vmatpush.xpose.msra.mxu0 0.0
    %358 = vmatpush.xpose.msra.mxu0 0.0
    %359 = vmatpush.xpose.msra.mxu0 0.0
    %360 = vmatpush.xpose.msra.mxu0 0.0
    %361 = vmatpush.xpose.msra.mxu0 0.0
    %362 = vmatpush.xpose.msra.mxu0 0.0
    %363 = vmatpush.xpose.msra.mxu0 0.0
    %364 = vmatpush.xpose.msra.mxu0 0.0
    %365 = vmatpush.xpose.msra.mxu0 0.0
    %366 = vmatpush.xpose.msra.mxu0 0.0
    %367 = vmatpush.xpose.msra.mxu0 0.0
    %368 = vmatpush.xpose.msra.mxu0 0.0
    %369 = vmatpush.xpose.msra.mxu0 0.0
    %370 = vmatpush.xpose.msra.mxu0 0.0
    %371 = vmatpush.xpose.msra.mxu0 %v355
    %372 = vmatpush.xpose.msra.mxu0 %v353
    %373 = vmatmul.f32.gmra.mxu0 %v349
    %v374 = vpop.f32.mrf.mxu0
    %v375 = vadd.f32 %v145, %v374
    %376 = vmatmul.f32.gmra.mxu0 %v351
    %v377 = vpop.f32.mrf.mxu0
    %v378 = vadd.f32 %v146, %v377
    %379 = vdwg.mxu0
    %v380 = vsel %vm185, %v375, -inf
    %381 = vmax.xlane.f32.xlu0 %v380
    %v382 = vpop.xlane.xlu0 %381
    %v383 = vsel %vm185, %v378, -inf
    %384 = vmax.xlane.f32.xlu0 %v383
    %v385 = vpop.xlane.xlu0 %384
    %v386 = vsub.f32 %v375, %v382
    %v387 = vsub.f32 %v378, %v385
    %v388 = vmul.f32 %v386, 1.442695
    %v389 = vpow.pop %v388
    %v390 = vmul.f32 %v387, 1.442695
    %v391 = vpow.pop %v390
    %v392 = vsel %vm185, %v389, 0.0
    %393 = vadd.xlane.f32.xlu0 %v392
    %v394 = vpop.xlane.xlu0 %393
    %v395 = vsel %vm185, %v391, 0.0
    %396 = vadd.xlane.f32.xlu0 %v395
    %v397 = vpop.xlane.xlu0 %396
    %v398 = vrcp.pop %v394
    %v399 = vrcp.pop %v397
    %v400 = vmul.f32 %v389, %v398
    %v401 = vmul.f32 %v391, %v399
    %402 = vrot.lane.b32.xlu0 %v140, 48
    %v403 = vpop.permute.xlu0 %402
    %404 = vrot.lane.b32.xlu0 %v143, 48
    %v405 = vpop.permute.xlu0 %404
    %v409 = vsel %vm185, %v400, 0
    %v412 = vsel %vm185, %v401, 0
    %414 = vmatpush.msra.mxu0 0.0
    %415 = vmatpush.msra.mxu0 0.0
    %416 = vmatpush.msra.mxu0 0.0
    %417 = vmatpush.msra.mxu0 0.0
    %418 = vmatpush.msra.mxu0 0.0
    %419 = vmatpush.msra.mxu0 0.0
    %420 = vmatpush.msra.mxu0 0.0
    %421 = vmatpush.msra.mxu0 0.0
    %422 = vmatpush.msra.mxu0 0.0
    %423 = vmatpush.msra.mxu0 0.0
    %424 = vmatpush.msra.mxu0 0.0
    %425 = vmatpush.msra.mxu0 0.0
    %426 = vmatpush.msra.mxu0 0.0
    %427 = vmatpush.msra.mxu0 0.0
    %428 = vmatpush.msra.mxu0 %v405
    %429 = vmatpush.msra.mxu0 %v403
    %430 = vmatmul.f32.gmra.mxu0 %v409
    %v431 = vpop.f32.mrf.mxu0
    %v432 = vadd.f32 0.0, %v431
    %433 = vmatmul.f32.gmra.mxu0 %v412
    %v434 = vpop.f32.mrf.mxu0
    %v435 = vadd.f32 0.0, %v434
    %436 = vdwg.mxu0
    %437 = vrot.lane.b32.xlu0 %v134, 104
    %v438 = vpop.permute.xlu0 %437
    %439 = vrot.lane.b32.xlu0 %v137, 104
    %v440 = vpop.permute.xlu0 %439
    %441 = vrot.lane.b32.xlu0 %v134, 72
    %v442 = vpop.permute.xlu0 %441
    %443 = vrot.lane.b32.xlu0 %v137, 72
    %v444 = vpop.permute.xlu0 %443
    %v445 = vsel %vm153, %v438, 0
    %v447 = vsel %vm153, %v440, 0
    %v449 = vsel %vm153, %v442, 0
    %v451 = vsel %vm153, %v444, 0
    %453 = vmatpush.xpose.msra.mxu0 0.0
    %454 = vmatpush.xpose.msra.mxu0 0.0
    %455 = vmatpush.xpose.msra.mxu0 0.0
    %456 = vmatpush.xpose.msra.mxu0 0.0
    %457 = vmatpush.xpose.msra.mxu0 0.0
    %458 = vmatpush.xpose.msra.mxu0 0.0
    %459 = vmatpush.xpose.msra.mxu0 0.0
    %460 = vmatpush.xpose.msra.mxu0 0.0
    %461 = vmatpush.xpose.msra.mxu0 0.0
    %462 = vmatpush.xpose.msra.mxu0 0.0
    %463 = vmatpush.xpose.msra.mxu0 0.0
    %464 = vmatpush.xpose.msra.mxu0 0.0
    %465 = vmatpush.xpose.msra.mxu0 0.0
    %466 = vmatpush.xpose.msra.mxu0 0.0
    %467 = vmatpush.xpose.msra.mxu0 %v451
    %468 = vmatpush.xpose.msra.mxu0 %v449
    %469 = vmatmul.f32.gmra.mxu0 %v445
    %v470 = vpop.f32.mrf.mxu0
    %v471 = vadd.f32 %v145, %v470
    %472 = vmatmul.f32.gmra.mxu0 %v447
    %v473 = vpop.f32.mrf.mxu0
    %v474 = vadd.f32 %v146, %v473
    %475 = vdwg.mxu0
    %v476 = vsel %vm185, %v471, -inf
    %477 = vmax.xlane.f32.xlu0 %v476
    %v478 = vpop.xlane.xlu0 %477
    %v479 = vsel %vm185, %v474, -inf
    %480 = vmax.xlane.f32.xlu0 %v479
    %v481 = vpop.xlane.xlu0 %480
    %v482 = vsub.f32 %v471, %v478
    %v483 = vsub.f32 %v474, %v481
    %v484 = vmul.f32 %v482, 1.442695
    %v485 = vpow.pop %v484
    %v486 = vmul.f32 %v483, 1.442695
    %v487 = vpow.pop %v486
    %v488 = vsel %vm185, %v485, 0.0
    %489 = vadd.xlane.f32.xlu0 %v488
    %v490 = vpop.xlane.xlu0 %489
    %v491 = vsel %vm185, %v487, 0.0
    %492 = vadd.xlane.f32.xlu0 %v491
    %v493 = vpop.xlane.xlu0 %492
    %v494 = vrcp.pop %v490
    %v495 = vrcp.pop %v493
    %v496 = vmul.f32 %v485, %v494
    %v497 = vmul.f32 %v487, %v495
    %498 = vrot.lane.b32.xlu0 %v140, 40
    %v499 = vpop.permute.xlu0 %498
    %500 = vrot.lane.b32.xlu0 %v143, 40
    %v501 = vpop.permute.xlu0 %500
    %v505 = vsel %vm185, %v496, 0
    %v508 = vsel %vm185, %v497, 0
    %510 = vmatpush.msra.mxu0 0.0
    %511 = vmatpush.msra.mxu0 0.0
    %512 = vmatpush.msra.mxu0 0.0
    %513 = vmatpush.msra.mxu0 0.0
    %514 = vmatpush.msra.mxu0 0.0
    %515 = vmatpush.msra.mxu0 0.0
    %516 = vmatpush.msra.mxu0 0.0
    %517 = vmatpush.msra.mxu0 0.0
    %518 = vmatpush.msra.mxu0 0.0
    %519 = vmatpush.msra.mxu0 0.0
    %520 = vmatpush.msra.mxu0 0.0
    %521 = vmatpush.msra.mxu0 0.0
    %522 = vmatpush.msra.mxu0 0.0
    %523 = vmatpush.msra.mxu0 0.0
    %524 = vmatpush.msra.mxu0 %v501
    %525 = vmatpush.msra.mxu0 %v499
    %526 = vmatmul.f32.gmra.mxu0 %v505
    %v527 = vpop.f32.mrf.mxu0
    %v528 = vadd.f32 0.0, %v527
    %529 = vmatmul.f32.gmra.mxu0 %v508
    %v530 = vpop.f32.mrf.mxu0
    %v531 = vadd.f32 0.0, %v530
    %532 = vdwg.mxu0
    %535 = vrot.lane.b32.xlu0 %v336, 8
    %v536 = vpop.permute.xlu0 %535
    %537 = vrot.lane.b32.xlu0 %v339, 8
    %v538 = vpop.permute.xlu0 %537
    %543 = vrot.lane.b32.xlu0 %v432, 16
    %v544 = vpop.permute.xlu0 %543
    %545 = vrot.lane.b32.xlu0 %v435, 16
    %v546 = vpop.permute.xlu0 %545
    %551 = vrot.lane.b32.xlu0 %v528, 24
    %v552 = vpop.permute.xlu0 %551
    %553 = vrot.lane.b32.xlu0 %v531, 24
    %v554 = vpop.permute.xlu0 %553
    %v557 = vsel %vm153, %v240, %v536
    %v558 = vsel %vm153, %v243, %v538
    %v559 = vsel %vm185, %v557, %v544
    %v560 = vsel %vm185, %v558, %v546
    %vm561 = vcmask 195584
    %v562 = vsel %vm561, %v559, %v552
    %v563 = vsel %vm561, %v560, %v554
    %v564 = vld [vmem:[%s4] sm:$0xff]
    %v565 = vld [vmem:[%s4 + $0x8] sm:$0xff]
    %v566 = vld [vmem:[%s4 + $0x10] sm:$0xff]
    %v567 = vld [vmem:[%s4 + $0x18] sm:$0xff]
    %v568 = vperm.slane %v97, 1
    %v570 = vsel %vm103, %v562, 0
    %v573 = vsel %vm103, %v563, 0
    %575 = vmatpush.msra.mxu0 0.0
    %576 = vmatpush.msra.mxu0 0.0
    %577 = vmatpush.msra.mxu0 0.0
    %578 = vmatpush.msra.mxu0 0.0
    %579 = vmatpush.msra.mxu0 0.0
    %580 = vmatpush.msra.mxu0 0.0
    %581 = vmatpush.msra.mxu0 0.0
    %582 = vmatpush.msra.mxu0 0.0
    %583 = vmatpush.msra.mxu0 0.0
    %584 = vmatpush.msra.mxu0 0.0
    %585 = vmatpush.msra.mxu0 0.0
    %586 = vmatpush.msra.mxu0 0.0
    %587 = vmatpush.msra.mxu0 %v567
    %588 = vmatpush.msra.mxu0 %v566
    %589 = vmatpush.msra.mxu0 %v565
    %590 = vmatpush.msra.mxu0 %v564
    %591 = vmatmul.f32.gmra.mxu0 %v570
    %v592 = vpop.f32.mrf.mxu0
    %v593 = vadd.f32 %v568, %v592
    %594 = vmatmul.f32.gmra.mxu0 %v573
    %v595 = vpop.f32.mrf.mxu0
    %v596 = vadd.f32 %v568, %v595
    %597 = vdwg.mxu0
    %v598 = vadd.f32 %v91, %v593
    %v599 = vadd.f32 %v92, %v596
    %v600 = vsel %vm103, %v598, 0.0
    %601 = vadd.xlane.f32.xlu0 %v600
    %v602 = vpop.xlane.xlu0 %601
    %v603 = vsel %vm103, %v599, 0.0
    %604 = vadd.xlane.f32.xlu0 %v603
    %v605 = vpop.xlane.xlu0 %604
    %v606 = vrcp.pop 32.0
    %v607 = vmul.f32 32.0, %v606
    %v608 = vsub.f32 1.0, %v607
    %v609 = vmul.f32 %v606, %v608
    %v610 = vadd.f32 %v606, %v609
    %vm611 = vweird.f32 %v606
    %v612 = vsel %vm611, %v606, %v610
    %v613 = vmul.f32 %v602, %v612
    %v614 = vmul.f32 %v605, %v612
    %v615 = vsub.f32 %v598, %v613
    %v616 = vsub.f32 %v599, %v614
    %v617 = vmul.f32 %v615, %v615
    %v618 = vmul.f32 %v616, %v616
    %v619 = vsel %vm103, %v617, 0.0
    %620 = vadd.xlane.f32.xlu0 %v619
    %v621 = vpop.xlane.xlu0 %620
    %v622 = vsel %vm103, %v618, 0.0
    %623 = vadd.xlane.f32.xlu0 %v622
    %v624 = vpop.xlane.xlu0 %623
    %v625 = vmul.f32 %v621, %v612
    %v626 = vmul.f32 %v624, %v612
    %v627 = vadd.f32 %v625, 1e-05
    %v628 = vadd.f32 %v626, 1e-05
    %v629 = vrsqrt.pop %v627
    %v630 = vmul.f32 %v629, %v627
    %v631 = vmul.f32 %v630, %v629
    %v632 = vmul.f32 0.5, %v631
    %v633 = vsub.f32 1.5, %v632
    %v634 = vmul.f32 %v629, %v633
    %vm635 = vweird.f32 %v627
    %vm636 = vweird.f32 %v629
    %vm637 = vmor %vm635, %vm636
    %v638 = vsel %vm637, %v629, %v634
    %v639 = vrsqrt.pop %v628
    %v640 = vmul.f32 %v639, %v628
    %v641 = vmul.f32 %v640, %v639
    %v642 = vmul.f32 0.5, %v641
    %v643 = vsub.f32 1.5, %v642
    %v644 = vmul.f32 %v639, %v643
    %vm645 = vweird.f32 %v628
    %vm646 = vweird.f32 %v639
    %vm647 = vmor %vm645, %vm646
    %v648 = vsel %vm647, %v639, %v644
    %v649 = vmul.f32 %v615, %v638
    %v650 = vmul.f32 %v616, %v648
    %v651 = vperm.slane %v97, 4
    %v652 = vmul.f32 %v649, %v651
    %v653 = vmul.f32 %v650, %v651
    %v654 = vperm.slane %v97, 5
    %v655 = vadd.f32 %v652, %v654
    %v656 = vadd.f32 %v653, %v654
    %v657 = vld [vmem:[%s5] sm:$0xff]
    %v658 = vld [vmem:[%s5 + $0x8] sm:$0xff]
    %v659 = vld [vmem:[%s5 + $0x10] sm:$0xff]
    %v660 = vld [vmem:[%s5 + $0x18] sm:$0xff]
    %v661 = vperm.slane %v97, 2
    %v663 = vsel %vm103, %v655, 0
    %v666 = vsel %vm103, %v656, 0
    %668 = vmatpush.msra.mxu0 0.0
    %669 = vmatpush.msra.mxu0 0.0
    %670 = vmatpush.msra.mxu0 0.0
    %671 = vmatpush.msra.mxu0 0.0
    %672 = vmatpush.msra.mxu0 0.0
    %673 = vmatpush.msra.mxu0 0.0
    %674 = vmatpush.msra.mxu0 0.0
    %675 = vmatpush.msra.mxu0 0.0
    %676 = vmatpush.msra.mxu0 0.0
    %677 = vmatpush.msra.mxu0 0.0
    %678 = vmatpush.msra.mxu0 0.0
    %679 = vmatpush.msra.mxu0 0.0
    %680 = vmatpush.msra.mxu0 %v660
    %681 = vmatpush.msra.mxu0 %v659
    %682 = vmatpush.msra.mxu0 %v658
    %683 = vmatpush.msra.mxu0 %v657
    %684 = vmatmul.f32.gmra.mxu0 %v663
    %v685 = vpop.f32.mrf.mxu0
    %v686 = vadd.f32 %v661, %v685
    %687 = vmatmul.f32.gmra.mxu0 %v666
    %v688 = vpop.f32.mrf.mxu0
    %v689 = vadd.f32 %v661, %v688
    %690 = vdwg.mxu0
    %v691 = vmax.f32 %v686, 0.0
    %v692 = vmax.f32 %v689, 0.0
    %v693 = vld [vmem:[%s6] sm:$0xff]
    %v694 = vld [vmem:[%s6 + $0x8] sm:$0xff]
    %v695 = vld [vmem:[%s6 + $0x10] sm:$0xff]
    %v696 = vld [vmem:[%s6 + $0x18] sm:$0xff]
    %v697 = vld [vmem:[%s6 + $0x20] sm:$0xff]
    %v698 = vld [vmem:[%s6 + $0x28] sm:$0xff]
    %v699 = vld [vmem:[%s6 + $0x30] sm:$0xff]
    %v700 = vld [vmem:[%s6 + $0x38] sm:$0xff]
    %v701 = vperm.slane %v97, 3
    %vm702 = vcmask 523264
    %v704 = vsel %vm702, %v691, 0
    %v707 = vsel %vm702, %v692, 0
    %709 = vmatpush.msra.mxu0 0.0
    %710 = vmatpush.msra.mxu0 0.0
    %711 = vmatpush.msra.mxu0 0.0
    %712 = vmatpush.msra.mxu0 0.0
    %713 = vmatpush.msra.mxu0 0.0
    %714 = vmatpush.msra.mxu0 0.0
    %715 = vmatpush.msra.mxu0 0.0
    %716 = vmatpush.msra.mxu0 0.0
    %717 = vmatpush.msra.mxu0 %v700
    %718 = vmatpush.msra.mxu0 %v699
    %719 = vmatpush.msra.mxu0 %v698
    %720 = vmatpush.msra.mxu0 %v697
    %721 = vmatpush.msra.mxu0 %v696
    %722 = vmatpush.msra.mxu0 %v695
    %723 = vmatpush.msra.mxu0 %v694
    %724 = vmatpush.msra.mxu0 %v693
    %725 = vmatmul.f32.gmra.mxu0 %v704
    %v726 = vpop.f32.mrf.mxu0
    %v727 = vadd.f32 %v701, %v726
    %728 = vmatmul.f32.gmra.mxu0 %v707
    %v729 = vpop.f32.mrf.mxu0
    %v730 = vadd.f32 %v701, %v729
    %731 = vdwg.mxu0
    %v732 = vadd.f32 %v655, %v727
    %v733 = vadd.f32 %v656, %v730
    %v734 = vsel %vm103, %v732, 0.0
    %735 = vadd.xlane.f32.xlu0 %v734
    %v736 = vpop.xlane.xlu0 %735
    %v737 = vsel %vm103, %v733, 0.0
    %738 = vadd.xlane.f32.xlu0 %v737
    %v739 = vpop.xlane.xlu0 %738
    %v740 = vmul.f32 %v736, %v612
    %v741 = vmul.f32 %v739, %v612
    %v742 = vsub.f32 %v732, %v740
    %v743 = vsub.f32 %v733, %v741
    %v744 = vmul.f32 %v742, %v742
    %v745 = vmul.f32 %v743, %v743
    %v746 = vsel %vm103, %v744, 0.0
    %747 = vadd.xlane.f32.xlu0 %v746
    %v748 = vpop.xlane.xlu0 %747
    %v749 = vsel %vm103, %v745, 0.0
    %750 = vadd.xlane.f32.xlu0 %v749
    %v751 = vpop.xlane.xlu0 %750
    %v752 = vmul.f32 %v748, %v612
    %v753 = vmul.f32 %v751, %v612
    %v754 = vadd.f32 %v752, 1e-05
    %v755 = vadd.f32 %v753, 1e-05
    %v756 = vrsqrt.pop %v754
    %v757 = vmul.f32 %v756, %v754
    %v758 = vmul.f32 %v757, %v756
    %v759 = vmul.f32 0.5, %v758
    %v760 = vsub.f32 1.5, %v759
    %v761 = vmul.f32 %v756, %v760
    %vm762 = vweird.f32 %v754
    %vm763 = vweird.f32 %v756
    %vm764 = vmor %vm762, %vm763
    %v765 = vsel %vm764, %v756, %v761
    %v766 = vrsqrt.pop %v755
    %v767 = vmul.f32 %v766, %v755
    %v768 = vmul.f32 %v767, %v766
    %v769 = vmul.f32 0.5, %v768
    %v770 = vsub.f32 1.5, %v769
    %v771 = vmul.f32 %v766, %v770
    %vm772 = vweird.f32 %v755
    %vm773 = vweird.f32 %v766
    %vm774 = vmor %vm772, %vm773
    %v775 = vsel %vm774, %v766, %v771
    %v776 = vmul.f32 %v742, %v765
    %v777 = vmul.f32 %v743, %v775
    %v778 = vperm.slane %v97, 6
    %v779 = vmul.f32 %v776, %v778
    %v780 = vmul.f32 %v777, %v778
    %v781 = vperm.slane %v97, 7
    %v782 = vadd.f32 %v779, %v781
    %v783 = vadd.f32 %v780, %v781
    %784 = vst.msk [vmem:[#allocation10] sm:$0xff] %vm103, %v782
    %785 = vst.msk [vmem:[#allocation10 + $0x8] sm:$0xff] %vm103, %v783
    // Predicated region
    $region50: #{tpu_custom_call.1} parent=1 // pred_check
      _
    $region51: #{tpu_custom_call.1} parent=1 // pred_check_branch
      %787 = sbr.rel (0) target = $region53
    $region52: #{tpu_custom_call.1} parent=1 // pred_region
      %789 = vsyncadd [#allocation4], 0
      %s790 = sshll.u32 [#allocation10], 4
      %s791 = int_to_ptr.vmem [resolvable:$true] %s790
      %s792 = sshll.u32 %s8, 4
      %s793 = int_to_ptr.hbm [resolvable:$true] %s792
      %798 = dma.vmem_to_hbm [thread:$0]  %s791, 256, %s793, [#allocation4], 128, 128, 8
    $region53: #{tpu_custom_call.1} parent=1 // pred_fallthru
      _
    // Predicated region
    $region54: #{tpu_custom_call.1} parent=1 // pred_check
      _
    $region55: #{tpu_custom_call.1} parent=1 // pred_check_branch
      %800 = sbr.rel (0) target = $region57
    $region56: #{tpu_custom_call.1} parent=1 // pred_region
      %802 = dma.done [#allocation4], 256
    $region57: #{tpu_custom_call.1} parent=1 // pred_fallthru
      _
    %803 = vsyncpa [#allocation3], 1
    %804 = vsyncpa [#allocation6], 1
    %805 = vsyncpa [#allocation9], 1
    %806 = vsyncpa [#allocation4], 1

</llo_original>
